<compile_context>
chip_gen: v7x
topology: tpu7x:2x2x1
jax: 0.10.0
libtpu: 0.0.40
codegen_flags: <defaults>
</compile_context>

<pallas_src>
import jax
import jax.numpy as jnp
from jax.experimental import pallas as pl
from jax.experimental.pallas import tpu as pltpu

# ----------------------------- model dims ----------------------------------
B = 2            # batch
T = 8            # number of video frames (dim=1 in torch.max)
VISUAL_DIM = 32
HIDDEN_DIM = 32
EPS = 1e-12


# ----------------------------- Pallas kernel -------------------------------
def _make_kernel(batch, frames, hidden):
    def kernel(x_ref,                    # (B*T, Dv) visual_feats (batch folded)
               gv_ref, bv_ref,           # (1, Dv)   LayerNorm(visual_dim)
               w1_ref, b1_ref,           # (Dv, H), (1, H)  video Linear
               gh_ref, bh_ref,           # (1, H)    LayerNorm(hidden_dim)
               wcat_ref, bcat_ref,       # (H, H+Dv), (1, H+Dv)  fused obj+fc
               sem_ref,                  # (B*T, Dv) object/action semantics
               vmax_ref,                 # (B, H)    max values  (torch.max dim=1)
               vidx_ref):                # (B, H)    argmax indices (int32)
        x = x_ref[...]                                        # (B*T, Dv)

        # --- LayerNorm(visual_dim) -> Dropout(identity, eval) -> Linear -> ReLU
        mu = jnp.mean(x, axis=-1, keepdims=True)
        var = jnp.mean((x - mu) ** 2, axis=-1, keepdims=True)
        xn = (x - mu) * jax.lax.rsqrt(var + EPS)
        xn = xn * gv_ref[...] + bv_ref[...]

        h = jnp.dot(xn, w1_ref[...], preferred_element_type=jnp.float32) + b1_ref[...]
        h = jnp.maximum(h, 0.0)                               # ReLU(inplace)

        # --- LayerNorm(hidden_dim)
        mu2 = jnp.mean(h, axis=-1, keepdims=True)
        var2 = jnp.mean((h - mu2) ** 2, axis=-1, keepdims=True)
        hn = (h - mu2) * jax.lax.rsqrt(var2 + EPS)
        hn = hn * gh_ref[...] + bh_ref[...]                   # (B*T, H)

        # --- fused object_embeddings + fc_layer:
        #     W_cat = [W_obj | W_obj @ W_fc], b_cat = [b_obj | b_obj @ W_fc + b_fc]
        y = jnp.dot(hn, wcat_ref[...], preferred_element_type=jnp.float32) + bcat_ref[...]
        obj = y[:, :hidden]               # object_hidden_states / action_features
        sem_ref[...] = y[:, hidden:]      # object_semantics (== action_semantics)

        # --- torch.max(action_features, dim=1) -> (values, indices) per batch
        for b in range(batch):            # unrolled at trace time (tiny B)
            blk = obj[b * frames:(b + 1) * frames, :]              # (T, H)
            vmax = jnp.max(blk, axis=0, keepdims=True)             # (1, H)
            tids = jax.lax.broadcasted_iota(jnp.int32, blk.shape, 0)
            # first-occurrence argmax (matches torch.max indices)
            idx = jnp.min(jnp.where(blk == vmax, tids, frames),
                          axis=0, keepdims=True).astype(jnp.int32)
            vmax_ref[pl.ds(b, 1), :] = vmax
            vidx_ref[pl.ds(b, 1), :] = idx
    return kernel


# ----------------------------- wrapper --------------------------------------
def tands_forward(visual_feats, params):
    """visual_feats: (B, T, VISUAL_DIM) float32.
    Returns ((max_values (B,H), max_indices (B,H) int32),
             object_semantics (B,T,Dv), action_semantics (B,T,Dv))."""
    b, t, dv = visual_feats.shape
    h = params["w1"].shape[1]
    bt = b * t

    # Fold batch into the matmul M dimension (single-program kernel).
    x2d = visual_feats.reshape(bt, dv)

    # Pre-fuse object_embeddings and fc_layer into one (H, H+Dv) weight.
    w_cat = jnp.concatenate(
        [params["w_obj"], params["w_obj"] @ params["w_fc"]], axis=1)
    b_cat = jnp.concatenate(
        [params["b_obj"], params["b_obj"] @ params["w_fc"] + params["b_fc"]], axis=1)

    def full(shape):
        return pl.BlockSpec(shape, lambda i: (0,) * len(shape))

    out_shapes = (
        jax.ShapeDtypeStruct((bt, dv), jnp.float32),   # semantics (reshaped outside)
        jax.ShapeDtypeStruct((b, h), jnp.float32),     # max values
        jax.ShapeDtypeStruct((b, h), jnp.int32),       # max indices
    )

    flops = 2 * bt * dv * h + 2 * bt * h * (h + dv)
    bytes_accessed = 4 * (bt * dv                       # input
                          + 2 * dv + dv * h + 3 * h     # LN_v, W1/b1, LN_h
                          + h * (h + dv) + (h + dv)     # fused weight/bias
                          + bt * dv + 2 * b * h)        # outputs
    cost = pl.CostEstimate(flops=flops, transcendentals=2 * bt,
                           bytes_accessed=bytes_accessed)

    sem, vmax, vidx = pl.pallas_call(
        _make_kernel(b, t, h),
        grid=(1,),
        in_specs=[
            full((bt, dv)),                       # visual_feats (batch folded)
            full((1, dv)), full((1, dv)),         # LN_vd gamma/beta
            full((dv, h)), full((1, h)),          # W1, b1
            full((1, h)), full((1, h)),           # LN_hd gamma/beta
            full((h, h + dv)), full((1, h + dv)), # fused W_cat, b_cat
        ],
        out_specs=(
            full((bt, dv)),
            full((b, h)),
            full((b, h)),
        ),
        out_shape=out_shapes,
        compiler_params=pltpu.CompilerParams(dimension_semantics=("arbitrary",)),
        cost_estimate=cost,
    )(
        x2d,
        params["ln_v_g"], params["ln_v_b"],
        params["w1"], params["b1"],
        params["ln_h_g"], params["ln_h_b"],
        w_cat, b_cat,
    )

    obj_sem = sem.reshape(b, t, dv)
    # torch.max returns int64 indices; TPU-friendly int32 is kept here.
    video_features = (vmax, vidx)
    # action_semantics == object_semantics on this path -> return the same array.
    return video_features, obj_sem, obj_sem


# ----------------------------- param init -----------------------------------
def init_params(key):
    ks = jax.random.split(key, 4)
    scale = 0.1
    return {
        # LayerNorm defaults: weight=ones, bias=zeros
        "ln_v_g": jnp.ones((1, VISUAL_DIM), jnp.float32),
        "ln_v_b": jnp.zeros((1, VISUAL_DIM), jnp.float32),
        "ln_h_g": jnp.ones((1, HIDDEN_DIM), jnp.float32),
        "ln_h_b": jnp.zeros((1, HIDDEN_DIM), jnp.float32),
        # Linear weights stored as (in, out)
        "w1":    scale * jax.random.normal(ks[0], (VISUAL_DIM, HIDDEN_DIM), jnp.float32),
        "b1":    jnp.zeros((1, HIDDEN_DIM), jnp.float32),
        "w_obj": scale * jax.random.normal(ks[1], (HIDDEN_DIM, HIDDEN_DIM), jnp.float32),
        "b_obj": 0.01 * jnp.ones((1, HIDDEN_DIM), jnp.float32),
        "w_fc":  scale * jax.random.normal(ks[2], (HIDDEN_DIM, VISUAL_DIM), jnp.float32),
        "b_fc":  0.01 * jnp.ones((1, VISUAL_DIM), jnp.float32),
    }


# ----------------------------- reference (plain JAX, unfused) ---------------
def reference_forward(x, p):
    def ln(v, g, b):
        mu = jnp.mean(v, axis=-1, keepdims=True)
        var = jnp.mean((v - mu) ** 2, axis=-1, keepdims=True)
        return (v - mu) / jnp.sqrt(var + EPS) * g + b
    v = ln(x, p["ln_v_g"][0], p["ln_v_b"][0])
    v = jnp.maximum(v @ p["w1"] + p["b1"][0], 0.0)
    v = ln(v, p["ln_h_g"][0], p["ln_h_b"][0])
    obj = v @ p["w_obj"] + p["b_obj"][0]
    sem = obj @ p["w_fc"] + p["b_fc"][0]
    vmax = jnp.max(obj, axis=1)
    vidx = jnp.argmax(obj, axis=1).astype(jnp.int32)
    return (vmax, vidx), sem, sem


# ----------------------------- main ------------------------------------------
if __name__ == "__main__":
    key = jax.random.PRNGKey(0)
    k_in, k_par = jax.random.split(key)
    visual_feats = jax.random.normal(k_in, (B, T, VISUAL_DIM), jnp.float32)
    params = init_params(k_par)
    # NOTE: subject_feats=None, input_mask unused on this path, TorS='S';
    # dropout is identity (inference mode).
    # TODO(synk): use_SFT / use_module ('transformer'/'lstm') / use_ham branches
    # (encoder/decoder attention, LSTMs, HAM attention) are not exercised by
    # this configuration and are not implemented.

    (vmax, vidx), obj_sem, act_sem = tands_forward(visual_feats, params)
    jax.block_until_ready((vmax, vidx, obj_sem, act_sem))

    (rvmax, rvidx), robj, ract = reference_forward(visual_feats, params)
    assert jnp.allclose(vmax, rvmax, atol=1e-5), "max values mismatch"
    assert jnp.array_equal(vidx, rvidx), "max indices mismatch"
    assert jnp.allclose(obj_sem, robj, atol=1e-5), "object_semantics mismatch"
    assert jnp.allclose(act_sem, ract, atol=1e-5), "action_semantics mismatch"

    print("KERNEL_OK")
</pallas_src>

<mosaic_0001>
module attributes {stable_mosaic.version = 11 : i64} {
  func.func @kernel(%arg0: i32, %arg1: memref<16x32xf32, #tpu.memory_space<vmem>>, %arg2: memref<1x32xf32, #tpu.memory_space<vmem>>, %arg3: memref<1x32xf32, #tpu.memory_space<vmem>>, %arg4: memref<32x32xf32, #tpu.memory_space<vmem>>, %arg5: memref<1x32xf32, #tpu.memory_space<vmem>>, %arg6: memref<1x32xf32, #tpu.memory_space<vmem>>, %arg7: memref<1x32xf32, #tpu.memory_space<vmem>>, %arg8: memref<32x64xf32, #tpu.memory_space<vmem>>, %arg9: memref<1x64xf32, #tpu.memory_space<vmem>>, %arg10: memref<16x32xf32, #tpu.memory_space<vmem>>, %arg11: memref<2x32xf32, #tpu.memory_space<vmem>>, %arg12: memref<2x32xi32, #tpu.memory_space<vmem>>) attributes {dimension_semantics = [#tpu.dimension_semantics<arbitrary>], iteration_bounds = array<i64: 1>, scalar_prefetch = 0 : i64, scratch_operands = 0 : i64, tpu.core_type = #tpu.core_type<tc>, window_params = [{pipeline_mode = #tpu.pipeline_mode<synchronous>, transform_indices = @transform_0, window_bounds = array<i64: 16, 32>}, {pipeline_mode = #tpu.pipeline_mode<synchronous>, transform_indices = @transform_1, window_bounds = array<i64: 1, 32>}, {pipeline_mode = #tpu.pipeline_mode<synchronous>, transform_indices = @transform_2, window_bounds = array<i64: 1, 32>}, {pipeline_mode = #tpu.pipeline_mode<synchronous>, transform_indices = @transform_3, window_bounds = array<i64: 32, 32>}, {pipeline_mode = #tpu.pipeline_mode<synchronous>, transform_indices = @transform_4, window_bounds = array<i64: 1, 32>}, {pipeline_mode = #tpu.pipeline_mode<synchronous>, transform_indices = @transform_5, window_bounds = array<i64: 1, 32>}, {pipeline_mode = #tpu.pipeline_mode<synchronous>, transform_indices = @transform_6, window_bounds = array<i64: 1, 32>}, {pipeline_mode = #tpu.pipeline_mode<synchronous>, transform_indices = @transform_7, window_bounds = array<i64: 32, 64>}, {pipeline_mode = #tpu.pipeline_mode<synchronous>, transform_indices = @transform_8, window_bounds = array<i64: 1, 64>}, {pipeline_mode = #tpu.pipeline_mode<synchronous>, transform_indices = @transform_9, window_bounds = array<i64: 16, 32>}, {pipeline_mode = #tpu.pipeline_mode<synchronous>, transform_indices = @transform_10, window_bounds = array<i64: 2, 32>}, {pipeline_mode = #tpu.pipeline_mode<synchronous>, transform_indices = @transform_11, window_bounds = array<i64: 2, 32>}]} {
    %c0 = arith.constant 0 : index
    %c0_0 = arith.constant 0 : index
    %0 = vector.load %arg1[%c0, %c0_0] : memref<16x32xf32, #tpu.memory_space<vmem>>, vector<16x32xf32>
    %cst = arith.constant dense<0.000000e+00> : vector<16xf32>
    %1 = vector.multi_reduction <add>, %0, %cst [1] : vector<16x32xf32> to vector<16xf32>
    %2 = vector.shape_cast %1 : vector<16xf32> to vector<16x1xf32>
    %cst_1 = arith.constant 3.200000e+01 : f32
    %3 = vector.broadcast %cst_1 : f32 to vector<16x1xf32>
    %4 = arith.divf %2, %3 : vector<16x1xf32>
    %5 = vector.broadcast %4 : vector<16x1xf32> to vector<16x32xf32>
    %6 = arith.subf %0, %5 : vector<16x32xf32>
    %7 = arith.mulf %6, %6 : vector<16x32xf32>
    %cst_2 = arith.constant dense<0.000000e+00> : vector<16xf32>
    %8 = vector.multi_reduction <add>, %7, %cst_2 [1] : vector<16x32xf32> to vector<16xf32>
    %9 = vector.shape_cast %8 : vector<16xf32> to vector<16x1xf32>
    %cst_3 = arith.constant 3.200000e+01 : f32
    %10 = vector.broadcast %cst_3 : f32 to vector<16x1xf32>
    %11 = arith.divf %9, %10 : vector<16x1xf32>
    %12 = vector.broadcast %4 : vector<16x1xf32> to vector<16x32xf32>
    %13 = arith.subf %0, %12 : vector<16x32xf32>
    %cst_4 = arith.constant 9.99999996E-13 : f32
    %14 = vector.broadcast %cst_4 : f32 to vector<16x1xf32>
    %15 = arith.addf %11, %14 : vector<16x1xf32>
    %16 = math.rsqrt %15 : vector<16x1xf32>
    %17 = vector.broadcast %16 : vector<16x1xf32> to vector<16x32xf32>
    %18 = arith.mulf %13, %17 : vector<16x32xf32>
    %c0_5 = arith.constant 0 : index
    %c0_6 = arith.constant 0 : index
    %19 = vector.load %arg2[%c0_5, %c0_6] : memref<1x32xf32, #tpu.memory_space<vmem>>, vector<1x32xf32>
    %20 = vector.broadcast %19 : vector<1x32xf32> to vector<16x32xf32>
    %21 = arith.mulf %18, %20 : vector<16x32xf32>
    %c0_7 = arith.constant 0 : index
    %c0_8 = arith.constant 0 : index
    %22 = vector.load %arg3[%c0_7, %c0_8] : memref<1x32xf32, #tpu.memory_space<vmem>>, vector<1x32xf32>
    %23 = vector.broadcast %22 : vector<1x32xf32> to vector<16x32xf32>
    %24 = arith.addf %21, %23 : vector<16x32xf32>
    %c0_9 = arith.constant 0 : index
    %c0_10 = arith.constant 0 : index
    %25 = vector.load %arg4[%c0_9, %c0_10] : memref<32x32xf32, #tpu.memory_space<vmem>>, vector<32x32xf32>
    %cst_11 = arith.constant dense<0.000000e+00> : vector<16x32xf32>
    %26 = tpu.matmul %24, %25, %cst_11 {dimension_numbers = #tpu.dot_dimension_numbers<[1], [0], [0], [1], [0, 0, 1, 1], [], []>} : vector<16x32xf32>, vector<32x32xf32>, vector<16x32xf32> -> vector<16x32xf32>
    %c0_12 = arith.constant 0 : index
    %c0_13 = arith.constant 0 : index
    %27 = vector.load %arg5[%c0_12, %c0_13] : memref<1x32xf32, #tpu.memory_space<vmem>>, vector<1x32xf32>
    %28 = vector.broadcast %27 : vector<1x32xf32> to vector<16x32xf32>
    %29 = arith.addf %26, %28 : vector<16x32xf32>
    %cst_14 = arith.constant 0.000000e+00 : f32
    %30 = vector.broadcast %cst_14 : f32 to vector<16x32xf32>
    %31 = arith.maximumf %29, %30 : vector<16x32xf32>
    %cst_15 = arith.constant dense<0.000000e+00> : vector<16xf32>
    %32 = vector.multi_reduction <add>, %31, %cst_15 [1] : vector<16x32xf32> to vector<16xf32>
    %33 = vector.shape_cast %32 : vector<16xf32> to vector<16x1xf32>
    %cst_16 = arith.constant 3.200000e+01 : f32
    %34 = vector.broadcast %cst_16 : f32 to vector<16x1xf32>
    %35 = arith.divf %33, %34 : vector<16x1xf32>
    %36 = vector.broadcast %35 : vector<16x1xf32> to vector<16x32xf32>
    %37 = arith.subf %31, %36 : vector<16x32xf32>
    %38 = arith.mulf %37, %37 : vector<16x32xf32>
    %cst_17 = arith.constant dense<0.000000e+00> : vector<16xf32>
    %39 = vector.multi_reduction <add>, %38, %cst_17 [1] : vector<16x32xf32> to vector<16xf32>
    %40 = vector.shape_cast %39 : vector<16xf32> to vector<16x1xf32>
    %cst_18 = arith.constant 3.200000e+01 : f32
    %41 = vector.broadcast %cst_18 : f32 to vector<16x1xf32>
    %42 = arith.divf %40, %41 : vector<16x1xf32>
    %43 = vector.broadcast %35 : vector<16x1xf32> to vector<16x32xf32>
    %44 = arith.subf %31, %43 : vector<16x32xf32>
    %cst_19 = arith.constant 9.99999996E-13 : f32
    %45 = vector.broadcast %cst_19 : f32 to vector<16x1xf32>
    %46 = arith.addf %42, %45 : vector<16x1xf32>
    %47 = math.rsqrt %46 : vector<16x1xf32>
    %48 = vector.broadcast %47 : vector<16x1xf32> to vector<16x32xf32>
    %49 = arith.mulf %44, %48 : vector<16x32xf32>
    %c0_20 = arith.constant 0 : index
    %c0_21 = arith.constant 0 : index
    %50 = vector.load %arg6[%c0_20, %c0_21] : memref<1x32xf32, #tpu.memory_space<vmem>>, vector<1x32xf32>
    %51 = vector.broadcast %50 : vector<1x32xf32> to vector<16x32xf32>
    %52 = arith.mulf %49, %51 : vector<16x32xf32>
    %c0_22 = arith.constant 0 : index
    %c0_23 = arith.constant 0 : index
    %53 = vector.load %arg7[%c0_22, %c0_23] : memref<1x32xf32, #tpu.memory_space<vmem>>, vector<1x32xf32>
    %54 = vector.broadcast %53 : vector<1x32xf32> to vector<16x32xf32>
    %55 = arith.addf %52, %54 : vector<16x32xf32>
    %c0_24 = arith.constant 0 : index
    %c0_25 = arith.constant 0 : index
    %56 = vector.load %arg8[%c0_24, %c0_25] : memref<32x64xf32, #tpu.memory_space<vmem>>, vector<32x64xf32>
    %cst_26 = arith.constant dense<0.000000e+00> : vector<16x64xf32>
    %57 = tpu.matmul %55, %56, %cst_26 {dimension_numbers = #tpu.dot_dimension_numbers<[1], [0], [0], [1], [0, 0, 1, 1], [], []>} : vector<16x32xf32>, vector<32x64xf32>, vector<16x64xf32> -> vector<16x64xf32>
    %c0_27 = arith.constant 0 : index
    %c0_28 = arith.constant 0 : index
    %58 = vector.load %arg9[%c0_27, %c0_28] : memref<1x64xf32, #tpu.memory_space<vmem>>, vector<1x64xf32>
    %59 = vector.broadcast %58 : vector<1x64xf32> to vector<16x64xf32>
    %60 = arith.addf %57, %59 : vector<16x64xf32>
    %61 = vector.extract_strided_slice %60 {offsets = [0, 0], sizes = [16, 32], strides = [1, 1]} : vector<16x64xf32> to vector<16x32xf32>
    %62 = vector.extract_strided_slice %60 {offsets = [0, 32], sizes = [16, 32], strides = [1, 1]} : vector<16x64xf32> to vector<16x32xf32>
    %c0_29 = arith.constant 0 : index
    %c0_30 = arith.constant 0 : index
    %63 = vector.load %arg10[%c0_29, %c0_30] : memref<16x32xf32, #tpu.memory_space<vmem>>, vector<16x32xf32>
    tpu.vector_store %arg10[%c0_29, %c0_30], %62 {strides = array<i32>} : memref<16x32xf32, #tpu.memory_space<vmem>>, vector<16x32xf32>,
    %64 = vector.extract_strided_slice %61 {offsets = [0, 0], sizes = [8, 32], strides = [1, 1]} : vector<16x32xf32> to vector<8x32xf32>
    %cst_31 = arith.constant dense<0xFF800000> : vector<32xf32>
    %65 = vector.multi_reduction <maximumf>, %64, %cst_31 [0] : vector<8x32xf32> to vector<32xf32>
    %66 = vector.shape_cast %65 : vector<32xf32> to vector<1x32xf32>
    %67 = tpu.iota {dimensions = array<i32: 0>} : vector<8x32xi32>
    %68 = vector.broadcast %66 : vector<1x32xf32> to vector<8x32xf32>
    %69 = arith.cmpf oeq, %64, %68 : vector<8x32xf32>
    %c8_i32 = arith.constant 8 : i32
    %70 = vector.broadcast %c8_i32 : i32 to vector<8x32xi32>
    %71 = arith.select %69, %67, %70 : vector<8x32xi1>, vector<8x32xi32>
    %cst_32 = arith.constant dense<2147483647> : vector<32xi32>
    %72 = vector.multi_reduction <minsi>, %71, %cst_32 [0] : vector<8x32xi32> to vector<32xi32>
    %73 = vector.shape_cast %72 : vector<32xi32> to vector<1x32xi32>
    %c0_33 = arith.constant 0 : index
    %c0_34 = arith.constant 0 : index
    %74 = vector.load %arg11[%c0_33, %c0_34] : memref<2x32xf32, #tpu.memory_space<vmem>>, vector<1x32xf32>
    tpu.vector_store %arg11[%c0_33, %c0_34], %66 {strides = array<i32>} : memref<2x32xf32, #tpu.memory_space<vmem>>, vector<1x32xf32>,
    %c0_35 = arith.constant 0 : index
    %c0_36 = arith.constant 0 : index
    %75 = vector.load %arg12[%c0_35, %c0_36] : memref<2x32xi32, #tpu.memory_space<vmem>>, vector<1x32xi32>
    tpu.vector_store %arg12[%c0_35, %c0_36], %73 {strides = array<i32>} : memref<2x32xi32, #tpu.memory_space<vmem>>, vector<1x32xi32>,
    %76 = vector.extract_strided_slice %61 {offsets = [8, 0], sizes = [8, 32], strides = [1, 1]} : vector<16x32xf32> to vector<8x32xf32>
    %cst_37 = arith.constant dense<0xFF800000> : vector<32xf32>
    %77 = vector.multi_reduction <maximumf>, %76, %cst_37 [0] : vector<8x32xf32> to vector<32xf32>
    %78 = vector.shape_cast %77 : vector<32xf32> to vector<1x32xf32>
    %79 = tpu.iota {dimensions = array<i32: 0>} : vector<8x32xi32>
    %80 = vector.broadcast %78 : vector<1x32xf32> to vector<8x32xf32>
    %81 = arith.cmpf oeq, %76, %80 : vector<8x32xf32>
    %c8_i32_38 = arith.constant 8 : i32
    %82 = vector.broadcast %c8_i32_38 : i32 to vector<8x32xi32>
    %83 = arith.select %81, %79, %82 : vector<8x32xi1>, vector<8x32xi32>
    %cst_39 = arith.constant dense<2147483647> : vector<32xi32>
    %84 = vector.multi_reduction <minsi>, %83, %cst_39 [0] : vector<8x32xi32> to vector<32xi32>
    %85 = vector.shape_cast %84 : vector<32xi32> to vector<1x32xi32>
    %c1 = arith.constant 1 : index
    %c0_40 = arith.constant 0 : index
    %86 = vector.load %arg11[%c1, %c0_40] : memref<2x32xf32, #tpu.memory_space<vmem>>, vector<1x32xf32>
    tpu.vector_store %arg11[%c1, %c0_40], %78 {strides = array<i32>} : memref<2x32xf32, #tpu.memory_space<vmem>>, vector<1x32xf32>,
    %c1_41 = arith.constant 1 : index
    %c0_42 = arith.constant 0 : index
    %87 = vector.load %arg12[%c1_41, %c0_42] : memref<2x32xi32, #tpu.memory_space<vmem>>, vector<1x32xi32>
    tpu.vector_store %arg12[%c1_41, %c0_42], %85 {strides = array<i32>} : memref<2x32xi32, #tpu.memory_space<vmem>>, vector<1x32xi32>,
    return
  }
  func.func @transform_0(%arg0: i32) -> (i32, i32) {
    %c0_i32 = arith.constant 0 : i32
    %c0_i32_0 = arith.constant 0 : i32
    %c0_i32_1 = arith.constant 0 : i32
    return %c0_i32, %c0_i32_0 : i32, i32
  }
  func.func @transform_1(%arg0: i32) -> (i32, i32) {
    %c0_i32 = arith.constant 0 : i32
    %c0_i32_0 = arith.constant 0 : i32
    %c0_i32_1 = arith.constant 0 : i32
    return %c0_i32, %c0_i32_0 : i32, i32
  }
  func.func @transform_2(%arg0: i32) -> (i32, i32) {
    %c0_i32 = arith.constant 0 : i32
    %c0_i32_0 = arith.constant 0 : i32
    %c0_i32_1 = arith.constant 0 : i32
    return %c0_i32, %c0_i32_0 : i32, i32
  }
  func.func @transform_3(%arg0: i32) -> (i32, i32) {
    %c0_i32 = arith.constant 0 : i32
    %c0_i32_0 = arith.constant 0 : i32
    %c0_i32_1 = arith.constant 0 : i32
    return %c0_i32, %c0_i32_0 : i32, i32
  }
  func.func @transform_4(%arg0: i32) -> (i32, i32) {
    %c0_i32 = arith.constant 0 : i32
    %c0_i32_0 = arith.constant 0 : i32
    %c0_i32_1 = arith.constant 0 : i32
    return %c0_i32, %c0_i32_0 : i32, i32
  }
  func.func @transform_5(%arg0: i32) -> (i32, i32) {
    %c0_i32 = arith.constant 0 : i32
    %c0_i32_0 = arith.constant 0 : i32
    %c0_i32_1 = arith.constant 0 : i32
    return %c0_i32, %c0_i32_0 : i32, i32
  }
  func.func @transform_6(%arg0: i32) -> (i32, i32) {
    %c0_i32 = arith.constant 0 : i32
    %c0_i32_0 = arith.constant 0 : i32
    %c0_i32_1 = arith.constant 0 : i32
    return %c0_i32, %c0_i32_0 : i32, i32
  }
  func.func @transform_7(%arg0: i32) -> (i32, i32) {
    %c0_i32 = arith.constant 0 : i32
    %c0_i32_0 = arith.constant 0 : i32
    %c0_i32_1 = arith.constant 0 : i32
    return %c0_i32, %c0_i32_0 : i32, i32
  }
  func.func @transform_8(%arg0: i32) -> (i32, i32) {
    %c0_i32 = arith.constant 0 : i32
    %c0_i32_0 = arith.constant 0 : i32
    %c0_i32_1 = arith.constant 0 : i32
    return %c0_i32, %c0_i32_0 : i32, i32
  }
  func.func @transform_9(%arg0: i32) -> (i32, i32) {
    %c0_i32 = arith.constant 0 : i32
    %c0_i32_0 = arith.constant 0 : i32
    %c0_i32_1 = arith.constant 0 : i32
    return %c0_i32, %c0_i32_0 : i32, i32
  }
  func.func @transform_10(%arg0: i32) -> (i32, i32) {
    %c0_i32 = arith.constant 0 : i32
    %c0_i32_0 = arith.constant 0 : i32
    %c0_i32_1 = arith.constant 0 : i32
    return %c0_i32, %c0_i32_0 : i32, i32
  }
  func.func @transform_11(%arg0: i32) -> (i32, i32) {
    %c0_i32 = arith.constant 0 : i32
    %c0_i32_0 = arith.constant 0 : i32
    %c0_i32_1 = arith.constant 0 : i32
    return %c0_i32, %c0_i32_0 : i32, i32
  }
}

</mosaic_0001>

<llo_original>
// kernel: tpu_custom_call.1
$region0: #{tpu_custom_call.1}
  #allocation0 [shape = 'u32[]', space=smem, size = 0x4, offset = 0x4, fixed_abs, tag = 'smem constant byte address 0x4 - core index']
  #allocation1 [shape = 'u32[144,128]{1,0:T(1,128)}', space=vmem, size = 0x12000, scoped, tag = 'internal scratch']
  %s0 = inlined_call_operand.hbm [shape: f32[16,32], index: 0, kind: input, shape index: {}]
  %s1 = inlined_call_operand.vmem [shape: f32[1,32], index: 1, kind: input, shape index: {}]
  %s2 = inlined_call_operand.vmem [shape: f32[1,32], index: 2, kind: input, shape index: {}]
  %s3 = inlined_call_operand.hbm [shape: f32[32,32], index: 3, kind: input, shape index: {}]
  %s4 = inlined_call_operand.vmem [shape: f32[1,32], index: 4, kind: input, shape index: {}]
  %s5 = inlined_call_operand.vmem [shape: f32[1,32], index: 5, kind: input, shape index: {}]
  %s6 = inlined_call_operand.vmem [shape: f32[1,32], index: 6, kind: input, shape index: {}]
  %s7 = inlined_call_operand.hbm [shape: f32[32,64], index: 7, kind: input, shape index: {}]
  %s8 = inlined_call_operand.vmem [shape: f32[1,64], index: 8, kind: input, shape index: {}]
  %s9 = inlined_call_operand.hbm [shape: f32[16,32], index: 9, kind: output, shape index: {0}]
  %s10 = inlined_call_operand.hbm [shape: f32[2,32], index: 10, kind: output, shape index: {1}]
  %s11 = inlined_call_operand.hbm [shape: s32[2,32], index: 11, kind: output, shape index: {2}]
  %12 = xla_tuple %s9, %s10, %s11
  %s13 = sld [smem:[#allocation0]]
  $region74: #{tpu_custom_call.1} parent=0
    _
  %s15 = ssub.s32 1, %s13
  %s16 = scalar_select 0, %s15, %s13
  $region1: #{tpu_custom_call.1} parent=0
    #allocation2 [shape = 'u8[8192]{0}', space=vmem, size = 0x2000, scoped, tag = 'input window, operand 0, single buffered']
    #allocation3 [shape = 's32[1]{0}', space=sflag, size = 0x4, scoped, tag = 'scoped memory for tpu_custom_call.1']
    #allocation4 [shape = 's32[1]{0}', space=sflag, size = 0x4, scoped, tag = 'scoped memory for tpu_custom_call.1']
    #allocation5 [shape = 'u8[16384]{0}', space=vmem, size = 0x4000, scoped, tag = 'input window, operand 3, single buffered']
    #allocation6 [shape = 's32[1]{0}', space=sflag, size = 0x4, scoped, tag = 'scoped memory for tpu_custom_call.1']
    #allocation7 [shape = 'u8[16384]{0}', space=vmem, size = 0x4000, scoped, tag = 'input window, operand 7, single buffered']
    #allocation8 [shape = 'u8[8192]{0}', space=vmem, size = 0x2000, scoped, tag = 'output window, operand 0, single buffered']
    #allocation9 [shape = 'u8[1024]{0}', space=vmem, size = 0x400, scoped, tag = 'output window, operand 1, single buffered']
    #allocation10 [shape = 's32[1]{0}', space=sflag, size = 0x4, scoped, tag = 'scoped memory for tpu_custom_call.1']
    #allocation11 [shape = 'u8[1024]{0}', space=vmem, size = 0x400, scoped, tag = 'output window, operand 2, single buffered']
    %17 = vsyncpa [#allocation3], 0
    %18 = vsyncpa [#allocation6], 0
    %19 = vsyncpa [#allocation4], 0
    %20 = vsyncpa [#allocation10], 0
    // Predicated region
    $region2: #{tpu_custom_call.1} parent=1 // pred_check
      _
    $region3: #{tpu_custom_call.1} parent=1 // pred_check_branch
      %22 = sbr.rel (0) target = $region5
    $region4: #{tpu_custom_call.1} parent=1 // pred_region
      %s24 = ssub.s32 256, 256
      %25 = vsyncadd [#allocation3], %s24
      %s26 = sshll.u32 [#allocation2], 4
      %s27 = int_to_ptr.vmem [resolvable:$true] %s26
      %32 = dma.hbm_to_vmem [thread:$0]  %s0, 256, %s27, [#allocation3], 128, 128, 8
    $region5: #{tpu_custom_call.1} parent=1 // pred_fallthru
      _
    // Predicated region
    $region6: #{tpu_custom_call.1} parent=1 // pred_check
      _
    $region7: #{tpu_custom_call.1} parent=1 // pred_check_branch
      %34 = sbr.rel (0) target = $region9
    $region8: #{tpu_custom_call.1} parent=1 // pred_region
      _
    $region9: #{tpu_custom_call.1} parent=1 // pred_fallthru
      _
    // Predicated region
    $region10: #{tpu_custom_call.1} parent=1 // pred_check
      _
    $region11: #{tpu_custom_call.1} parent=1 // pred_check_branch
      %36 = sbr.rel (0) target = $region13
    $region12: #{tpu_custom_call.1} parent=1 // pred_region
      _
    $region13: #{tpu_custom_call.1} parent=1 // pred_fallthru
      _
    // Predicated region
    $region14: #{tpu_custom_call.1} parent=1 // pred_check
      _
    $region15: #{tpu_custom_call.1} parent=1 // pred_check_branch
      %38 = sbr.rel (0) target = $region17
    $region16: #{tpu_custom_call.1} parent=1 // pred_region
      %s40 = ssub.s32 512, 512
      %41 = vsyncadd [#allocation6], %s40
      %s42 = sshll.u32 [#allocation5], 4
      %s43 = int_to_ptr.vmem [resolvable:$true] %s42
      %48 = dma.hbm_to_vmem [thread:$0]  %s3, 512, %s43, [#allocation6], 128, 128, 8
    $region17: #{tpu_custom_call.1} parent=1 // pred_fallthru
      _
    // Predicated region
    $region18: #{tpu_custom_call.1} parent=1 // pred_check
      _
    $region19: #{tpu_custom_call.1} parent=1 // pred_check_branch
      %50 = sbr.rel (0) target = $region21
    $region20: #{tpu_custom_call.1} parent=1 // pred_region
      _
    $region21: #{tpu_custom_call.1} parent=1 // pred_fallthru
      _
    // Predicated region
    $region22: #{tpu_custom_call.1} parent=1 // pred_check
      _
    $region23: #{tpu_custom_call.1} parent=1 // pred_check_branch
      %52 = sbr.rel (0) target = $region25
    $region24: #{tpu_custom_call.1} parent=1 // pred_region
      _
    $region25: #{tpu_custom_call.1} parent=1 // pred_fallthru
      _
    // Predicated region
    $region26: #{tpu_custom_call.1} parent=1 // pred_check
      _
    $region27: #{tpu_custom_call.1} parent=1 // pred_check_branch
      %54 = sbr.rel (0) target = $region29
    $region28: #{tpu_custom_call.1} parent=1 // pred_region
      _
    $region29: #{tpu_custom_call.1} parent=1 // pred_fallthru
      _
    // Predicated region
    $region30: #{tpu_custom_call.1} parent=1 // pred_check
      _
    $region31: #{tpu_custom_call.1} parent=1 // pred_check_branch
      %56 = sbr.rel (0) target = $region33
    $region32: #{tpu_custom_call.1} parent=1 // pred_region
      %s58 = ssub.s32 512, 512
      %59 = vsyncadd [#allocation6], %s58
      %s60 = sshll.u32 [#allocation7], 4
      %s61 = int_to_ptr.vmem [resolvable:$true] %s60
      %66 = dma.hbm_to_vmem [thread:$0]  %s7, 512, %s61, [#allocation6], 128, 128, 8
    $region33: #{tpu_custom_call.1} parent=1 // pred_fallthru
      _
    // Predicated region
    $region34: #{tpu_custom_call.1} parent=1 // pred_check
      _
    $region35: #{tpu_custom_call.1} parent=1 // pred_check_branch
      %68 = sbr.rel (0) target = $region37
    $region36: #{tpu_custom_call.1} parent=1 // pred_region
      _
    $region37: #{tpu_custom_call.1} parent=1 // pred_fallthru
      _
    // Predicated region
    $region38: #{tpu_custom_call.1} parent=1 // pred_check
      _
    $region39: #{tpu_custom_call.1} parent=1 // pred_check_branch
      %70 = sbr.rel (0) target = $region41
    $region40: #{tpu_custom_call.1} parent=1 // pred_region
      %71 = dma.done [#allocation3], 256
    $region41: #{tpu_custom_call.1} parent=1 // pred_fallthru
      _
    // Predicated region
    $region42: #{tpu_custom_call.1} parent=1 // pred_check
      _
    $region43: #{tpu_custom_call.1} parent=1 // pred_check_branch
      %73 = sbr.rel (0) target = $region45
    $region44: #{tpu_custom_call.1} parent=1 // pred_region
      %74 = dma.done [#allocation6], 512
    $region45: #{tpu_custom_call.1} parent=1 // pred_fallthru
      _
    // Predicated region
    $region46: #{tpu_custom_call.1} parent=1 // pred_check
      _
    $region47: #{tpu_custom_call.1} parent=1 // pred_check_branch
      %76 = sbr.rel (0) target = $region49
    $region48: #{tpu_custom_call.1} parent=1 // pred_region
      %77 = dma.done [#allocation6], 512
    $region49: #{tpu_custom_call.1} parent=1 // pred_fallthru
      _
    %v78 = vld [vmem:[#allocation2] sm:$0xff]
    %v79 = vld [vmem:[#allocation2 + $0x8] sm:$0xff]
    %vm80 = vcmask 261120
    %v81 = vsel %vm80, %v78, 0.0
    %82 = vadd.xlane.f32.xlu0 %v81
    %v83 = vpop.xlane.xlu0 %82
    %v84 = vsel %vm80, %v79, 0.0
    %85 = vadd.xlane.f32.xlu0 %v84
    %v86 = vpop.xlane.xlu0 %85
    %v87 = vrcp.pop 32.0
    %v88 = vmul.f32 %v83, %v87
    %v89 = vmul.f32 %v86, %v87
    %v90 = vsub.f32 %v78, %v88
    %v91 = vsub.f32 %v79, %v89
    %v92 = vmul.f32 %v90, %v90
    %v93 = vmul.f32 %v91, %v91
    %v94 = vsel %vm80, %v92, 0.0
    %95 = vadd.xlane.f32.xlu0 %v94
    %v96 = vpop.xlane.xlu0 %95
    %v97 = vsel %vm80, %v93, 0.0
    %98 = vadd.xlane.f32.xlu0 %v97
    %v99 = vpop.xlane.xlu0 %98
    %v100 = vmul.f32 %v96, %v87
    %v101 = vmul.f32 %v99, %v87
    %v102 = vadd.f32 %v100, 1e-12
    %v103 = vadd.f32 %v101, 1e-12
    %v104 = vrsqrt.pop %v102
    %v105 = vrsqrt.pop %v103
    %v106 = vmul.f32 %v90, %v104
    %v107 = vmul.f32 %v91, %v105
    %v108 = vld [vmem:[%s1] sm:$0x1]
    %v110 = vlaneseq
    %v111 = vshrl.u32 %v110, 7
    %v112 = vsub.s32 0, %v111
    %v113 = vrot.slane %v108, %v112
    %v115 = vmul.f32 %v106, %v113
    %v116 = vmul.f32 %v107, %v113
    %v117 = vld [vmem:[%s2] sm:$0x1]
    %v119 = vlaneseq
    %v120 = vshrl.u32 %v119, 7
    %v121 = vsub.s32 0, %v120
    %v122 = vrot.slane %v117, %v121
    %v124 = vadd.f32 %v115, %v122
    %v125 = vadd.f32 %v116, %v122
    %v126 = vld [vmem:[#allocation5] sm:$0xff]
    %v127 = vld [vmem:[#allocation5 + $0x8] sm:$0xff]
    %v128 = vld [vmem:[#allocation5 + $0x10] sm:$0xff]
    %v129 = vld [vmem:[#allocation5 + $0x18] sm:$0xff]
    %v130 = vld [vmem:[%s4] sm:$0x1]
    %v132 = vlaneseq
    %v133 = vshrl.u32 %v132, 7
    %v134 = vsub.s32 0, %v133
    %v135 = vrot.slane %v130, %v134
    %v138 = vsel %vm80, %v124, 0
    %v141 = vsel %vm80, %v125, 0
    %143 = vmatprep.subr.mxu0 0.0
    %144 = vmatpush1.msra.mxu0 %v126
    %145 = vmatprep.subr.mxu0 0.0
    %146 = vmatpush1.msra.mxu0 %v127
    %147 = vmatprep.subr.mxu0 0.0
    %148 = vmatpush1.msra.mxu0 %v128
    %149 = vmatprep.subr.mxu0 0.0
    %150 = vmatpush1.msra.mxu0 %v129
    %151 = vmatprep.subr.mxu0 0.0
    %152 = vmatpush1.msra.mxu0 0.0
    %153 = vmatprep.subr.mxu0 0.0
    %154 = vmatpush1.msra.mxu0 0.0
    %155 = vmatprep.subr.mxu0 0.0
    %156 = vmatpush1.msra.mxu0 0.0
    %157 = vmatprep.subr.mxu0 0.0
    %158 = vmatpush1.msra.mxu0 0.0
    %159 = vmatprep.subr.mxu0 0.0
    %160 = vmatpush1.msra.mxu0 0.0
    %161 = vmatprep.subr.mxu0 0.0
    %162 = vmatpush1.msra.mxu0 0.0
    %163 = vmatprep.subr.mxu0 0.0
    %164 = vmatpush1.msra.mxu0 0.0
    %165 = vmatprep.subr.mxu0 0.0
    %166 = vmatpush1.msra.mxu0 0.0
    %167 = vmatprep.subr.mxu0 0.0
    %168 = vmatpush1.msra.mxu0 0.0
    %169 = vmatprep.subr.mxu0 0.0
    %170 = vmatpush1.msra.mxu0 0.0
    %171 = vmatprep.subr.mxu0 0.0
    %172 = vmatpush1.msra.mxu0 0.0
    %173 = vmatprep.subr.mxu0 0.0
    %174 = vmatpush1.msra.mxu0 0.0
    %175 = vmatprep.subr.mxu0 0.0
    %176 = vmatpush1.msra.mxu0 0.0
    %177 = vmatprep.subr.mxu0 0.0
    %178 = vmatpush1.msra.mxu0 0.0
    %179 = vmatprep.subr.mxu0 0.0
    %180 = vmatpush1.msra.mxu0 0.0
    %181 = vmatprep.subr.mxu0 0.0
    %182 = vmatpush1.msra.mxu0 0.0
    %183 = vmatprep.subr.mxu0 0.0
    %184 = vmatpush1.msra.mxu0 0.0
    %185 = vmatprep.subr.mxu0 0.0
    %186 = vmatpush1.msra.mxu0 0.0
    %187 = vmatprep.subr.mxu0 0.0
    %188 = vmatpush1.msra.mxu0 0.0
    %189 = vmatprep.subr.mxu0 0.0
    %190 = vmatpush1.msra.mxu0 0.0
    %191 = vmatprep.subr.mxu0 0.0
    %192 = vmatpush1.msra.mxu0 0.0
    %193 = vmatprep.subr.mxu0 0.0
    %194 = vmatpush1.msra.mxu0 0.0
    %195 = vmatprep.subr.mxu0 0.0
    %196 = vmatpush1.msra.mxu0 0.0
    %197 = vmatprep.subr.mxu0 0.0
    %198 = vmatpush1.msra.mxu0 0.0
    %199 = vmatprep.subr.mxu0 0.0
    %200 = vmatpush1.msra.mxu0 0.0
    %201 = vmatprep.subr.mxu0 0.0
    %202 = vmatpush1.msra.mxu0 0.0
    %203 = vmatprep.subr.mxu0 0.0
    %204 = vmatpush1.msra.mxu0 0.0
    %205 = vmatprep.subr.mxu0 0.0
    %206 = vmatpush1.msra.mxu0 0.0
    %207 = vmatprep.mubr.f32.mxu0 0.0
    %208 = vmatmul.mubr.f32.gmra.mrb[0].mxu0 %v138
    %v209 = vpop.f32.mrb[0].mxu0
    %v210 = vadd.f32 %v135, %v209
    %v211 = vpop.f32.mrb[0].mxu0
    %212 = vmatprep.mubr.f32.mxu0 0.0
    %213 = vmatmul.mubr.f32.gmra.mrb[0].mxu0 %v141
    %v214 = vpop.f32.mrb[0].mxu0
    %v215 = vadd.f32 %v135, %v214
    %v216 = vpop.f32.mrb[0].mxu0
    %217 = vdwg.mxu0
    %v218 = vmax.f32 %v210, 0.0
    %v219 = vmax.f32 %v215, 0.0
    %v220 = vsel %vm80, %v218, 0.0
    %221 = vadd.xlane.f32.xlu0 %v220
    %v222 = vpop.xlane.xlu0 %221
    %v223 = vsel %vm80, %v219, 0.0
    %224 = vadd.xlane.f32.xlu0 %v223
    %v225 = vpop.xlane.xlu0 %224
    %v226 = vmul.f32 %v222, %v87
    %v227 = vmul.f32 %v225, %v87
    %v228 = vsub.f32 %v218, %v226
    %v229 = vsub.f32 %v219, %v227
    %v230 = vmul.f32 %v228, %v228
    %v231 = vmul.f32 %v229, %v229
    %v232 = vsel %vm80, %v230, 0.0
    %233 = vadd.xlane.f32.xlu0 %v232
    %v234 = vpop.xlane.xlu0 %233
    %v235 = vsel %vm80, %v231, 0.0
    %236 = vadd.xlane.f32.xlu0 %v235
    %v237 = vpop.xlane.xlu0 %236
    %v238 = vmul.f32 %v234, %v87
    %v239 = vmul.f32 %v237, %v87
    %v240 = vadd.f32 %v238, 1e-12
    %v241 = vadd.f32 %v239, 1e-12
    %v242 = vrsqrt.pop %v240
    %v243 = vrsqrt.pop %v241
    %v244 = vmul.f32 %v228, %v242
    %v245 = vmul.f32 %v229, %v243
    %v246 = vld [vmem:[%s5] sm:$0x1]
    %v248 = vlaneseq
    %v249 = vshrl.u32 %v248, 7
    %v250 = vsub.s32 0, %v249
    %v251 = vrot.slane %v246, %v250
    %v253 = vmul.f32 %v244, %v251
    %v254 = vmul.f32 %v245, %v251
    %v255 = vld [vmem:[%s6] sm:$0x1]
    %v257 = vlaneseq
    %v258 = vshrl.u32 %v257, 7
    %v259 = vsub.s32 0, %v258
    %v260 = vrot.slane %v255, %v259
    %v262 = vadd.f32 %v253, %v260
    %v263 = vadd.f32 %v254, %v260
    %v264 = vld [vmem:[#allocation7] sm:$0xff]
    %v265 = vld [vmem:[#allocation7 + $0x8] sm:$0xff]
    %v266 = vld [vmem:[#allocation7 + $0x10] sm:$0xff]
    %v267 = vld [vmem:[#allocation7 + $0x18] sm:$0xff]
    %v268 = vld [vmem:[%s8] sm:$0x1]
    %v270 = vlaneseq
    %v271 = vshrl.u32 %v270, 7
    %v272 = vsub.s32 0, %v271
    %v273 = vrot.slane %v268, %v272
    %v276 = vsel %vm80, %v262, 0
    %v279 = vsel %vm80, %v263, 0
    %281 = vmatprep.subr.mxu0 0.0
    %282 = vmatpush1.msra.mxu0 %v264
    %283 = vmatprep.subr.mxu0 0.0
    %284 = vmatpush1.msra.mxu0 %v265
    %285 = vmatprep.subr.mxu0 0.0
    %286 = vmatpush1.msra.mxu0 %v266
    %287 = vmatprep.subr.mxu0 0.0
    %288 = vmatpush1.msra.mxu0 %v267
    %289 = vmatprep.subr.mxu0 0.0
    %290 = vmatpush1.msra.mxu0 0.0
    %291 = vmatprep.subr.mxu0 0.0
    %292 = vmatpush1.msra.mxu0 0.0
    %293 = vmatprep.subr.mxu0 0.0
    %294 = vmatpush1.msra.mxu0 0.0
    %295 = vmatprep.subr.mxu0 0.0
    %296 = vmatpush1.msra.mxu0 0.0
    %297 = vmatprep.subr.mxu0 0.0
    %298 = vmatpush1.msra.mxu0 0.0
    %299 = vmatprep.subr.mxu0 0.0
    %300 = vmatpush1.msra.mxu0 0.0
    %301 = vmatprep.subr.mxu0 0.0
    %302 = vmatpush1.msra.mxu0 0.0
    %303 = vmatprep.subr.mxu0 0.0
    %304 = vmatpush1.msra.mxu0 0.0
    %305 = vmatprep.subr.mxu0 0.0
    %306 = vmatpush1.msra.mxu0 0.0
    %307 = vmatprep.subr.mxu0 0.0
    %308 = vmatpush1.msra.mxu0 0.0
    %309 = vmatprep.subr.mxu0 0.0
    %310 = vmatpush1.msra.mxu0 0.0
    %311 = vmatprep.subr.mxu0 0.0
    %312 = vmatpush1.msra.mxu0 0.0
    %313 = vmatprep.subr.mxu0 0.0
    %314 = vmatpush1.msra.mxu0 0.0
    %315 = vmatprep.subr.mxu0 0.0
    %316 = vmatpush1.msra.mxu0 0.0
    %317 = vmatprep.subr.mxu0 0.0
    %318 = vmatpush1.msra.mxu0 0.0
    %319 = vmatprep.subr.mxu0 0.0
    %320 = vmatpush1.msra.mxu0 0.0
    %321 = vmatprep.subr.mxu0 0.0
    %322 = vmatpush1.msra.mxu0 0.0
    %323 = vmatprep.subr.mxu0 0.0
    %324 = vmatpush1.msra.mxu0 0.0
    %325 = vmatprep.subr.mxu0 0.0
    %326 = vmatpush1.msra.mxu0 0.0
    %327 = vmatprep.subr.mxu0 0.0
    %328 = vmatpush1.msra.mxu0 0.0
    %329 = vmatprep.subr.mxu0 0.0
    %330 = vmatpush1.msra.mxu0 0.0
    %331 = vmatprep.subr.mxu0 0.0
    %332 = vmatpush1.msra.mxu0 0.0
    %333 = vmatprep.subr.mxu0 0.0
    %334 = vmatpush1.msra.mxu0 0.0
    %335 = vmatprep.subr.mxu0 0.0
    %336 = vmatpush1.msra.mxu0 0.0
    %337 = vmatprep.subr.mxu0 0.0
    %338 = vmatpush1.msra.mxu0 0.0
    %339 = vmatprep.subr.mxu0 0.0
    %340 = vmatpush1.msra.mxu0 0.0
    %341 = vmatprep.subr.mxu0 0.0
    %342 = vmatpush1.msra.mxu0 0.0
    %343 = vmatprep.subr.mxu0 0.0
    %344 = vmatpush1.msra.mxu0 0.0
    %345 = vmatprep.mubr.f32.mxu0 0.0
    %346 = vmatmul.mubr.f32.gmra.mrb[0].mxu0 %v276
    %v347 = vpop.f32.mrb[0].mxu0
    %v348 = vadd.f32 %v273, %v347
    %v349 = vpop.f32.mrb[0].mxu0
    %350 = vmatprep.mubr.f32.mxu0 0.0
    %351 = vmatmul.mubr.f32.gmra.mrb[0].mxu0 %v279
    %v352 = vpop.f32.mrb[0].mxu0
    %v353 = vadd.f32 %v273, %v352
    %v354 = vpop.f32.mrb[0].mxu0
    %355 = vdwg.mxu0
    %358 = vrot.lane.b32.xlu0 %v348, 96
    %v359 = vpop.permute.xlu0 %358
    %360 = vrot.lane.b32.xlu0 %v353, 96
    %v361 = vpop.permute.xlu0 %360
    %364 = vst.msk [vmem:[#allocation8] sm:$0xff] %vm80, %v359
    %365 = vst.msk [vmem:[#allocation8 + $0x8] sm:$0xff] %vm80, %v361
    %v366 = vsel %vm80, %v348, -inf
    %v367 = vrot.slane %v366, 4
    %v368 = vmax.f32 %v366, %v367
    %v369 = vrot.slane %v368, 2
    %v370 = vmax.f32 %v368, %v369
    %v371 = vrot.slane %v370, 1
    %v372 = vmax.f32 %v370, %v371
    %v373 = vlaneseq
    %v374 = vshrl.u32 %v373, 7
    %vm375 = vcmp.eq.f32.partialorder %v348, %v372
    %v376 = vsel %vm375, %v374, 8
    %v377 = vsel %vm80, %v376, 2147483647
    %v378 = vrot.slane %v377, 4
    %vm379 = vcmp.lt.s32.totalorder %v377, %v378
    %v380 = vsel %vm379, %v377, %v378
    %v381 = vrot.slane %v380, 2
    %vm382 = vcmp.lt.s32.totalorder %v380, %v381
    %v383 = vsel %vm382, %v380, %v381
    %v384 = vrot.slane %v383, 1
    %vm385 = vcmp.lt.s32.totalorder %v383, %v384
    %v386 = vsel %vm385, %v383, %v384
    %vm387 = vcmask 253952
    %388 = vst.msk [vmem:[#allocation9] sm:$0x1] %vm387, %v372
    %389 = vst.msk [vmem:[#allocation11] sm:$0x1] %vm387, %v386
    %v390 = vsel %vm80, %v353, -inf
    %v391 = vrot.slane %v390, 4
    %v392 = vmax.f32 %v390, %v391
    %v393 = vrot.slane %v392, 2
    %v394 = vmax.f32 %v392, %v393
    %v395 = vrot.slane %v394, 1
    %v396 = vmax.f32 %v394, %v395
    %vm397 = vcmp.eq.f32.partialorder %v353, %v396
    %v398 = vsel %vm397, %v374, 8
    %v399 = vsel %vm80, %v398, 2147483647
    %v400 = vrot.slane %v399, 4
    %vm401 = vcmp.lt.s32.totalorder %v399, %v400
    %v402 = vsel %vm401, %v399, %v400
    %v403 = vrot.slane %v402, 2
    %vm404 = vcmp.lt.s32.totalorder %v402, %v403
    %v405 = vsel %vm404, %v402, %v403
    %v406 = vrot.slane %v405, 1
    %vm407 = vcmp.lt.s32.totalorder %v405, %v406
    %v408 = vsel %vm407, %v405, %v406
    %409 = vst.msk [vmem:[#allocation9 + $0x1] sm:$0x1] %vm387, %v396
    %410 = vst.msk [vmem:[#allocation11 + $0x1] sm:$0x1] %vm387, %v408
    // Predicated region
    $region50: #{tpu_custom_call.1} parent=1 // pred_check
      _
    $region51: #{tpu_custom_call.1} parent=1 // pred_check_branch
      %412 = sbr.rel (0) target = $region53
    $region52: #{tpu_custom_call.1} parent=1 // pred_region
      %s414 = ssub.s32 256, 256
      %415 = vsyncadd [#allocation4], %s414
      %s416 = sshll.u32 [#allocation8], 4
      %s417 = int_to_ptr.vmem [resolvable:$true] %s416
      %422 = dma.vmem_to_hbm [thread:$0]  %s417, 256, %s9, [#allocation4], 128, 128, 8
    $region53: #{tpu_custom_call.1} parent=1 // pred_fallthru
      _
    // Predicated region
    $region54: #{tpu_custom_call.1} parent=1 // pred_check
      _
    $region55: #{tpu_custom_call.1} parent=1 // pred_check_branch
      %424 = sbr.rel (0) target = $region57
    $region56: #{tpu_custom_call.1} parent=1 // pred_region
      %s426 = ssub.s32 32, 32
      %427 = vsyncadd [#allocation10], %s426
      %s429 = sshll.u32 [#allocation9], 4
      %s430 = int_to_ptr.vmem [resolvable:$true] %s429
      %432 = dma.vmem_to_hbm [thread:$0]  %s430, 32, %s10, [#allocation10]
    $region57: #{tpu_custom_call.1} parent=1 // pred_fallthru
      _
    // Predicated region
    $region58: #{tpu_custom_call.1} parent=1 // pred_check
      _
    $region59: #{tpu_custom_call.1} parent=1 // pred_check_branch
      %434 = sbr.rel (0) target = $region61
    $region60: #{tpu_custom_call.1} parent=1 // pred_region
      %s436 = ssub.s32 32, 32
      %437 = vsyncadd [#allocation10], %s436
      %s439 = sshll.u32 [#allocation11], 4
      %s440 = int_to_ptr.vmem [resolvable:$true] %s439
      %442 = dma.vmem_to_hbm [thread:$0]  %s440, 32, %s11, [#allocation10]
    $region61: #{tpu_custom_call.1} parent=1 // pred_fallthru
      _
    // Predicated region
    $region62: #{tpu_custom_call.1} parent=1 // pred_check
      _
    $region63: #{tpu_custom_call.1} parent=1 // pred_check_branch
      %444 = sbr.rel (0) target = $region65
    $region64: #{tpu_custom_call.1} parent=1 // pred_region
      %445 = dma.done [#allocation4], 256
    $region65: #{tpu_custom_call.1} parent=1 // pred_fallthru
      _
    // Predicated region
    $region66: #{tpu_custom_call.1} parent=1 // pred_check
      _
    $region67: #{tpu_custom_call.1} parent=1 // pred_check_branch
      %447 = sbr.rel (0) target = $region69
    $region68: #{tpu_custom_call.1} parent=1 // pred_region
      %448 = dma.done [#allocation10], 32
    $region69: #{tpu_custom_call.1} parent=1 // pred_fallthru
      _
    // Predicated region
    $region70: #{tpu_custom_call.1} parent=1 // pred_check
      _
    $region71: #{tpu_custom_call.1} parent=1 // pred_check_branch
      %450 = sbr.rel (0) target = $region73
    $region72: #{tpu_custom_call.1} parent=1 // pred_region
      %451 = dma.done [#allocation10], 32
    $region73: #{tpu_custom_call.1} parent=1 // pred_fallthru
      _
    %452 = vsyncpa [#allocation3], 1
    %453 = vsyncpa [#allocation6], 1
    %454 = vsyncpa [#allocation4], 1
    %455 = vsyncpa [#allocation10], 1

</llo_original>
